<compile_context>
chip_gen: v5e
topology: v5e:2x2
jax: 0.10.0
libtpu: 0.0.40
codegen_flags: <defaults>
</compile_context>

<pallas_src>
import functools

import jax
import jax.numpy as jnp
from jax.experimental import pallas as pl
from jax.experimental.pallas import tpu as pltpu

INPUT_DIM = 64
H1 = 256
H2 = 128
OUT = 1
COL_ROWS = H1 + 2 * H2 + OUT  # packed [b1; b2; w3; b3]


def _cdiv(a, b):
    return (a + b - 1) // b


def _round_up(a, m):
    return _cdiv(a, m) * m


def _default_bm_max():
    """Generation-aware default batch tile cap (conservative fallback)."""
    try:
        kind = jax.devices()[0].device_kind.lower()
    except Exception:
        return 2048
    if ("v6" in kind) or ("v7" in kind):
        return 4096
    return 2048


def _disc_kernel(x_ref, w1_ref, w2_ref, col_ref, o_ref, *, bm, valid_b, mask_tail):
    # x_ref:   (bm, INPUT_DIM) f32 tile of the original batch-major input.
    # w1_ref:  (H1, INPUT_DIM) bf16   (resident across grid steps)
    # w2_ref:  (H2, H1)        bf16   (resident across grid steps)
    # col_ref: (COL_ROWS, 1)   f32 packed [b1; b2; w3; b3]
    # o_ref:   (1, bm) f32  -- batch on lanes (lane-dense store)
    x = x_ref[...].astype(jnp.bfloat16)

    b1 = col_ref[0:H1, :]                                   # (H1, 1)
    b2 = col_ref[H1:H1 + H2, :]                             # (H2, 1)
    w3 = col_ref[H1 + H2:H1 + 2 * H2, :]                    # (H2, 1)
    b3 = col_ref[H1 + 2 * H2:COL_ROWS, :]                   # (1, 1)

    # Layer 1: h1^T = W1 @ x^T  (contract feature dim of both operands; Mosaic does
    # the x layout change in VMEM, batch stays on lanes) -> (H1, bm), f32 acc.
    h1 = jax.lax.dot_general(
        w1_ref[...], x,
        dimension_numbers=(((1,), (1,)), ((), ())),
        preferred_element_type=jnp.float32)
    h1 = jnp.maximum(h1 + b1, 0.0).astype(jnp.bfloat16)

    # Layer 2: h2^T = W2 @ h1^T  (K=256 -> full-depth MXU pass) -> (H2, bm), f32 acc.
    h2 = jnp.dot(w2_ref[...], h1, preferred_element_type=jnp.float32)
    h2 = jnp.maximum(h2 + b2, 0.0)

    # Layer 3 (H2 -> 1): VPU multiply + sublane reduction instead of a 1-wide MXU pass.
    z = jnp.sum(h2 * w3, axis=0, keepdims=True) + b3        # (1, bm)

    if mask_tail:
        # Last tile may read past the end of x (Pallas-masked OOB read -> garbage
        # lanes). Zero those lanes before the epilogue so no garbage/NaN flows into
        # the (discarded) padded output lanes.
        lane = jax.lax.broadcasted_iota(jnp.int32, z.shape, 1) + pl.program_id(0) * bm
        z = jnp.where(lane < valid_b, z, 0.0)

    o_ref[...] = jax.nn.sigmoid(z).astype(o_ref.dtype)      # lane-dense store


def discriminator_forward(x, params, *, bm_max=None, lane_mult=256,
                          single_tile_max=512):
    """x: (B, INPUT_DIM). Returns (B, 1) float32 == sigmoid(MLP(x))."""
    w1, b1, w2, b2, w3, b3 = params
    B = x.shape[0]
    assert x.shape[1] == INPUT_DIM
    if x.dtype != jnp.float32:
        x = x.astype(jnp.float32)
    if bm_max is None:
        bm_max = _default_bm_max()

    # Constant prep (tiny): bf16 matmul operands, packed bias/w3 column.
    w1_bf = w1.astype(jnp.bfloat16)
    w2_bf = w2.astype(jnp.bfloat16)
    col = jnp.concatenate([
        b1.reshape(H1), b2.reshape(H2), w3.reshape(H2), b3.reshape(OUT)
    ]).reshape(COL_ROWS, 1).astype(jnp.float32)

    # Batch tiling: whole batch in one step when small; otherwise >= 2 tiles
    # (v7x megacore), rounded to 256-lane multiples (full MXU width, unmasked
    # stores), sized to minimize padding waste.
    if B <= single_tile_max:
        num_tiles, bm = 1, B
    else:
        num_tiles = max(2, _cdiv(B, bm_max))
        bm = _round_up(_cdiv(B, num_tiles), lane_mult)
        num_tiles = _cdiv(B, bm)
    Bp = num_tiles * bm

    kernel = functools.partial(_disc_kernel, bm=bm, valid_b=B,
                               mask_tail=(Bp != B))

    cost = pl.CostEstimate(
        flops=2 * B * (INPUT_DIM * H1 + H1 * H2 + H2 * OUT),
        transcendentals=B,                      # sigmoid
        bytes_accessed=4 * B * INPUT_DIM
        + 2 * (int(w1.size) + int(w2.size)) + 4 * int(col.size) + 4 * Bp,
    )

    out_row = pl.pallas_call(
        kernel,
        out_shape=jax.ShapeDtypeStruct((1, Bp), jnp.float32),
        grid_spec=pltpu.PrefetchScalarGridSpec(
            num_scalar_prefetch=0,
            grid=(num_tiles,),
            in_specs=[
                # x tile straight from the original (B, 64) array: no host x.T / pad.
                # TODO(synk): if the per-step input DMA shows up as exposed at large
                # bm, add pipeline_mode=pl.Buffered(3) on this spec.
                pl.BlockSpec((bm, INPUT_DIM), lambda i: (i, 0)),
                pl.BlockSpec((H1, INPUT_DIM), lambda i: (0, 0)),      # W1 bf16 (resident)
                pl.BlockSpec((H2, H1), lambda i: (0, 0)),             # W2 bf16 (resident)
                pl.BlockSpec((COL_ROWS, 1), lambda i: (0, 0)),        # packed [b1;b2;w3;b3]
            ],
            out_specs=pl.BlockSpec((1, bm), lambda i: (0, i)),        # lane-dense output
        ),
        compiler_params=pltpu.CompilerParams(
            dimension_semantics=("parallel",),
            vmem_limit_bytes=32 * 1024 * 1024,
        ),
        cost_estimate=cost,
    )(x, w1_bf, w2_bf, col)

    return out_row[0, :B].reshape(B, OUT)


def init_params(key):
    """PyTorch nn.Linear default init, stored in PyTorch (out, in) layout."""
    ks = jax.random.split(key, 6)

    def lin(kw, kb, fan_in, fan_out):
        bound = 1.0 / float(fan_in) ** 0.5
        w = jax.random.uniform(kw, (fan_out, fan_in), jnp.float32, -bound, bound)
        b = jax.random.uniform(kb, (fan_out,), jnp.float32, -bound, bound)
        return w, b

    w1, b1 = lin(ks[0], ks[1], INPUT_DIM, H1)
    w2, b2 = lin(ks[2], ks[3], H1, H2)
    w3, b3 = lin(ks[4], ks[5], H2, OUT)
    return (w1, b1, w2, b2, w3, b3)


def reference_forward(x, params):
    """Pure-JAX f32 reference matching the PyTorch module exactly."""
    w1, b1, w2, b2, w3, b3 = params
    h1 = jnp.maximum(x @ w1.T + b1, 0.0)
    h2 = jnp.maximum(h1 @ w2.T + b2, 0.0)
    return jax.nn.sigmoid(h2 @ w3.T + b3)


if __name__ == "__main__":
    key = jax.random.PRNGKey(0)
    k_params, k_x1, k_x2 = jax.random.split(key, 3)

    params = init_params(k_params)

    # Small batch: single grid step, block == whole array (no padding anywhere).
    x_small = jax.random.normal(k_x1, (8, INPUT_DIM), jnp.float32)
    out_small = jax.block_until_ready(discriminator_forward(x_small, params))
    ref_small = reference_forward(x_small, params)
    assert out_small.shape == (8, OUT)
    # bf16 MXU operands with f32 accumulation -> relaxed tolerance vs f32 reference.
    assert jnp.allclose(out_small, ref_small, atol=3e-2), "small-batch mismatch"

    # Larger, non-multiple batch: exercises multi-tile grid + in-kernel ragged
    # handling (OOB last input tile + lane mask), no host transpose/pad.
    x_big = jax.random.normal(k_x2, (640, INPUT_DIM), jnp.float32)
    out_big = jax.block_until_ready(discriminator_forward(x_big, params))
    ref_big = reference_forward(x_big, params)
    assert out_big.shape == (640, OUT)
    assert jnp.allclose(out_big, ref_big, atol=3e-2), "tiled-batch mismatch"

    print("KERNEL_OK")
</pallas_src>

<mosaic_0001>
module attributes {stable_mosaic.version = 11 : i64} {
  func.func @_disc_kernel(%arg0: i32, %arg1: memref<8x64xf32, #tpu.memory_space<vmem>>, %arg2: memref<256x64xbf16, #tpu.memory_space<vmem>>, %arg3: memref<128x256xbf16, #tpu.memory_space<vmem>>, %arg4: memref<513x1xf32, #tpu.memory_space<vmem>>, %arg5: memref<1x8xf32, #tpu.memory_space<vmem>>) attributes {dimension_semantics = [#tpu.dimension_semantics<parallel>], iteration_bounds = array<i64: 1>, scalar_prefetch = 0 : i64, scratch_operands = 0 : i64, tpu.core_type = #tpu.core_type<tc>, window_params = [{transform_indices = @transform_0, window_bounds = array<i64: 8, 64>}, {pipeline_mode = #tpu.pipeline_mode<synchronous>, transform_indices = @transform_1, window_bounds = array<i64: 256, 64>}, {pipeline_mode = #tpu.pipeline_mode<synchronous>, transform_indices = @transform_2, window_bounds = array<i64: 128, 256>}, {pipeline_mode = #tpu.pipeline_mode<synchronous>, transform_indices = @transform_3, window_bounds = array<i64: 513, 1>}, {transform_indices = @transform_4, window_bounds = array<i64: 1, 8>}]} {
    %c0 = arith.constant 0 : index
    %c0_0 = arith.constant 0 : index
    %0 = vector.load %arg1[%c0, %c0_0] : memref<8x64xf32, #tpu.memory_space<vmem>>, vector<8x64xf32>
    %1 = arith.truncf %0 : vector<8x64xf32> to vector<8x64xbf16>
    %c0_1 = arith.constant 0 : index
    %c0_2 = arith.constant 0 : index
    %2 = vector.load %arg4[%c0_1, %c0_2] : memref<513x1xf32, #tpu.memory_space<vmem>>, vector<256x1xf32>
    %c256 = arith.constant 256 : index
    %c0_3 = arith.constant 0 : index
    %3 = vector.load %arg4[%c256, %c0_3] : memref<513x1xf32, #tpu.memory_space<vmem>>, vector<128x1xf32>
    %c384 = arith.constant 384 : index
    %c0_4 = arith.constant 0 : index
    %4 = vector.load %arg4[%c384, %c0_4] : memref<513x1xf32, #tpu.memory_space<vmem>>, vector<128x1xf32>
    %c512 = arith.constant 512 : index
    %c0_5 = arith.constant 0 : index
    %5 = vector.load %arg4[%c512, %c0_5] : memref<513x1xf32, #tpu.memory_space<vmem>>, vector<1x1xf32>
    %c0_6 = arith.constant 0 : index
    %c0_7 = arith.constant 0 : index
    %6 = vector.load %arg2[%c0_6, %c0_7] : memref<256x64xbf16, #tpu.memory_space<vmem>>, vector<256x64xbf16>
    %cst = arith.constant dense<0.000000e+00> : vector<256x8xf32>
    %7 = tpu.matmul %6, %1, %cst {dimension_numbers = #tpu.dot_dimension_numbers<[1], [1], [0], [0], [0, 0, 1, 0], [], []>} : vector<256x64xbf16>, vector<8x64xbf16>, vector<256x8xf32> -> vector<256x8xf32>
    %8 = vector.broadcast %2 : vector<256x1xf32> to vector<256x8xf32>
    %9 = arith.addf %7, %8 : vector<256x8xf32>
    %cst_8 = arith.constant 0.000000e+00 : f32
    %10 = vector.broadcast %cst_8 : f32 to vector<256x8xf32>
    %11 = arith.maximumf %9, %10 : vector<256x8xf32>
    %12 = arith.truncf %11 : vector<256x8xf32> to vector<256x8xbf16>
    %c0_9 = arith.constant 0 : index
    %c0_10 = arith.constant 0 : index
    %13 = vector.load %arg3[%c0_9, %c0_10] : memref<128x256xbf16, #tpu.memory_space<vmem>>, vector<128x256xbf16>
    %cst_11 = arith.constant dense<0.000000e+00> : vector<128x8xf32>
    %14 = tpu.matmul %13, %12, %cst_11 {dimension_numbers = #tpu.dot_dimension_numbers<[1], [0], [0], [1], [0, 0, 1, 1], [], []>} : vector<128x256xbf16>, vector<256x8xbf16>, vector<128x8xf32> -> vector<128x8xf32>
    %15 = vector.broadcast %3 : vector<128x1xf32> to vector<128x8xf32>
    %16 = arith.addf %14, %15 : vector<128x8xf32>
    %cst_12 = arith.constant 0.000000e+00 : f32
    %17 = vector.broadcast %cst_12 : f32 to vector<128x8xf32>
    %18 = arith.maximumf %16, %17 : vector<128x8xf32>
    %19 = vector.broadcast %4 : vector<128x1xf32> to vector<128x8xf32>
    %20 = arith.mulf %18, %19 : vector<128x8xf32>
    %cst_13 = arith.constant dense<0.000000e+00> : vector<8xf32>
    %21 = vector.multi_reduction <add>, %20, %cst_13 [0] : vector<128x8xf32> to vector<8xf32>
    %22 = vector.shape_cast %21 : vector<8xf32> to vector<1x8xf32>
    %23 = vector.broadcast %5 : vector<1x1xf32> to vector<1x8xf32>
    %24 = arith.addf %22, %23 : vector<1x8xf32>
    %25 = arith.negf %24 : vector<1x8xf32>
    %26 = math.exp %25 : vector<1x8xf32>
    %cst_14 = arith.constant 1.000000e+00 : f32
    %27 = vector.broadcast %cst_14 : f32 to vector<1x8xf32>
    %28 = arith.addf %27, %26 : vector<1x8xf32>
    %29 = arith.divf %27, %28 : vector<1x8xf32>
    %c0_15 = arith.constant 0 : index
    %c0_16 = arith.constant 0 : index
    %30 = vector.load %arg5[%c0_15, %c0_16] : memref<1x8xf32, #tpu.memory_space<vmem>>, vector<1x8xf32>
    tpu.vector_store %arg5[%c0_15, %c0_16], %29 {strides = array<i32>} : memref<1x8xf32, #tpu.memory_space<vmem>>, vector<1x8xf32>,
    return
  }
  func.func @transform_0(%arg0: i32) -> (i32, i32) {
    %c0_i32 = arith.constant 0 : i32
    %c0_i32_0 = arith.constant 0 : i32
    return %arg0, %c0_i32 : i32, i32
  }
  func.func @transform_1(%arg0: i32) -> (i32, i32) {
    %c0_i32 = arith.constant 0 : i32
    %c0_i32_0 = arith.constant 0 : i32
    %c0_i32_1 = arith.constant 0 : i32
    return %c0_i32, %c0_i32_0 : i32, i32
  }
  func.func @transform_2(%arg0: i32) -> (i32, i32) {
    %c0_i32 = arith.constant 0 : i32
    %c0_i32_0 = arith.constant 0 : i32
    %c0_i32_1 = arith.constant 0 : i32
    return %c0_i32, %c0_i32_0 : i32, i32
  }
  func.func @transform_3(%arg0: i32) -> (i32, i32) {
    %c0_i32 = arith.constant 0 : i32
    %c0_i32_0 = arith.constant 0 : i32
    %c0_i32_1 = arith.constant 0 : i32
    return %c0_i32, %c0_i32_0 : i32, i32
  }
  func.func @transform_4(%arg0: i32) -> (i32, i32) {
    %c0_i32 = arith.constant 0 : i32
    %c0_i32_0 = arith.constant 0 : i32
    return %c0_i32, %arg0 : i32, i32
  }
}

</mosaic_0001>

<llo_original>
// kernel: tpu_custom_call.1
$region0: #{tpu_custom_call.1}
  #allocation0 [shape = 'u32[]', space=smem, size = 0x4, offset = 0x4, fixed_abs, tag = 'smem constant byte address 0x4 - core index']
  #allocation1 [shape = 'u32[72,128]{1,0:T(1,128)}', space=vmem, size = 0x9000, scoped, tag = 'internal scratch']
  %s0 = inlined_call_operand.vmem [shape: f32[8,64], index: 0, kind: input, shape index: {}]
  %s1 = inlined_call_operand.vmem [shape: bf16[256,64], index: 1, kind: input, shape index: {}]
  %s2 = inlined_call_operand.vmem [shape: bf16[128,256], index: 2, kind: input, shape index: {}]
  %s3 = inlined_call_operand.vmem [shape: f32[513,1], index: 3, kind: input, shape index: {}]
  %s4 = inlined_call_operand.hbm [shape: f32[1,8], index: 4, kind: output, shape index: {}]
  %s5 = sld [smem:[#allocation0]]
  $region26: #{tpu_custom_call.1} parent=0
    _
  %s7 = ssub.s32 1, %s5
  %s8 = scalar_select 0, %s7, %s5
  $region1: #{tpu_custom_call.1} parent=0
    #allocation2 [shape = 'u8[512]{0}', space=vmem, size = 0x400, scoped, tag = 'output window, operand 0, single buffered']
    #allocation3 [shape = 's32[1]{0}', space=sflag, size = 0x4, scoped, tag = 'scoped memory for tpu_custom_call.1']
    %9 = vsyncpa [#allocation3], 0
    // Predicated region
    $region2: #{tpu_custom_call.1} parent=1 // pred_check
      _
    $region3: #{tpu_custom_call.1} parent=1 // pred_check_branch
      %11 = sbr.rel (0) target = $region5
    $region4: #{tpu_custom_call.1} parent=1 // pred_region
      _
    $region5: #{tpu_custom_call.1} parent=1 // pred_fallthru
      _
    // Predicated region
    $region6: #{tpu_custom_call.1} parent=1 // pred_check
      _
    $region7: #{tpu_custom_call.1} parent=1 // pred_check_branch
      %13 = sbr.rel (0) target = $region9
    $region8: #{tpu_custom_call.1} parent=1 // pred_region
      _
    $region9: #{tpu_custom_call.1} parent=1 // pred_fallthru
      _
    // Predicated region
    $region10: #{tpu_custom_call.1} parent=1 // pred_check
      _
    $region11: #{tpu_custom_call.1} parent=1 // pred_check_branch
      %15 = sbr.rel (0) target = $region13
    $region12: #{tpu_custom_call.1} parent=1 // pred_region
      _
    $region13: #{tpu_custom_call.1} parent=1 // pred_fallthru
      _
    // Predicated region
    $region14: #{tpu_custom_call.1} parent=1 // pred_check
      _
    $region15: #{tpu_custom_call.1} parent=1 // pred_check_branch
      %17 = sbr.rel (0) target = $region17
    $region16: #{tpu_custom_call.1} parent=1 // pred_region
      _
    $region17: #{tpu_custom_call.1} parent=1 // pred_fallthru
      _
    %v19 = vld [vmem:[%s0] sm:$0xff]
    %v20 = vpack.c.bf16 %v19, %v19
    %v21 = vld [vmem:[%s3] sm:$0xff]
    %v22 = vld [vmem:[%s3 + $0x8] sm:$0xff]
    %v23 = vld [vmem:[%s3 + $0x10] sm:$0xff]
    %v24 = vld [vmem:[%s3 + $0x18] sm:$0xff]
    %v25 = vld [vmem:[%s3 + $0x20] sm:$0xff]
    %v26 = vld [vmem:[%s3 + $0x28] sm:$0xff]
    %v27 = vld [vmem:[%s3 + $0x30] sm:$0xff]
    %v28 = vld [vmem:[%s3 + $0x38] sm:$0xff]
    %v29 = vld [vmem:[%s3 + $0x40] sm:$0xff]
    %v30 = vld [vmem:[%s3 + $0x48] sm:$0xff]
    %v31 = vld [vmem:[%s3 + $0x50] sm:$0xff]
    %v32 = vld [vmem:[%s3 + $0x58] sm:$0xff]
    %v33 = vld [vmem:[%s3 + $0x60] sm:$0xff]
    %v34 = vld [vmem:[%s3 + $0x68] sm:$0xff]
    %v35 = vld [vmem:[%s3 + $0x70] sm:$0xff]
    %v36 = vld [vmem:[%s3 + $0x78] sm:$0xff]
    %v37 = vld [vmem:[%s3 + $0x80] sm:$0xff]
    %v38 = vld [vmem:[%s3 + $0x88] sm:$0xff]
    %v39 = vld [vmem:[%s3 + $0x90] sm:$0xff]
    %v40 = vld [vmem:[%s3 + $0x98] sm:$0xff]
    %v41 = vld [vmem:[%s3 + $0xa0] sm:$0xff]
    %v42 = vld [vmem:[%s3 + $0xa8] sm:$0xff]
    %v43 = vld [vmem:[%s3 + $0xb0] sm:$0xff]
    %v44 = vld [vmem:[%s3 + $0xb8] sm:$0xff]
    %v45 = vld [vmem:[%s3 + $0xc0] sm:$0xff]
    %v46 = vld [vmem:[%s3 + $0xc8] sm:$0xff]
    %v47 = vld [vmem:[%s3 + $0xd0] sm:$0xff]
    %v48 = vld [vmem:[%s3 + $0xd8] sm:$0xff]
    %v49 = vld [vmem:[%s3 + $0xe0] sm:$0xff]
    %v50 = vld [vmem:[%s3 + $0xe8] sm:$0xff]
    %v51 = vld [vmem:[%s3 + $0xf0] sm:$0xff]
    %v52 = vld [vmem:[%s3 + $0xf8] sm:$0xff]
    %v53 = vld [vmem:[%s3 + $0x100] sm:$0xff]
    %v54 = vld [vmem:[%s3 + $0x108] sm:$0xff]
    %v55 = vld [vmem:[%s3 + $0x110] sm:$0xff]
    %v56 = vld [vmem:[%s3 + $0x118] sm:$0xff]
    %v57 = vld [vmem:[%s3 + $0x120] sm:$0xff]
    %v58 = vld [vmem:[%s3 + $0x128] sm:$0xff]
    %v59 = vld [vmem:[%s3 + $0x130] sm:$0xff]
    %v60 = vld [vmem:[%s3 + $0x138] sm:$0xff]
    %v61 = vld [vmem:[%s3 + $0x140] sm:$0xff]
    %v62 = vld [vmem:[%s3 + $0x148] sm:$0xff]
    %v63 = vld [vmem:[%s3 + $0x150] sm:$0xff]
    %v64 = vld [vmem:[%s3 + $0x158] sm:$0xff]
    %v65 = vld [vmem:[%s3 + $0x160] sm:$0xff]
    %v66 = vld [vmem:[%s3 + $0x168] sm:$0xff]
    %v67 = vld [vmem:[%s3 + $0x170] sm:$0xff]
    %v68 = vld [vmem:[%s3 + $0x178] sm:$0xff]
    %v69 = vld [vmem:[%s3 + $0x180] sm:$0xff]
    %v70 = vld [vmem:[%s3 + $0x188] sm:$0xff]
    %v71 = vld [vmem:[%s3 + $0x190] sm:$0xff]
    %v72 = vld [vmem:[%s3 + $0x198] sm:$0xff]
    %v73 = vld [vmem:[%s3 + $0x1a0] sm:$0xff]
    %v74 = vld [vmem:[%s3 + $0x1a8] sm:$0xff]
    %v75 = vld [vmem:[%s3 + $0x1b0] sm:$0xff]
    %v76 = vld [vmem:[%s3 + $0x1b8] sm:$0xff]
    %v77 = vld [vmem:[%s3 + $0x1c0] sm:$0xff]
    %v78 = vld [vmem:[%s3 + $0x1c8] sm:$0xff]
    %v79 = vld [vmem:[%s3 + $0x1d0] sm:$0xff]
    %v80 = vld [vmem:[%s3 + $0x1d8] sm:$0xff]
    %v81 = vld [vmem:[%s3 + $0x1e0] sm:$0xff]
    %v82 = vld [vmem:[%s3 + $0x1e8] sm:$0xff]
    %v83 = vld [vmem:[%s3 + $0x1f0] sm:$0xff]
    %v84 = vld [vmem:[%s3 + $0x1f8] sm:$0xff]
    %v85 = vld [vmem:[%s3 + $0x200] sm:$0x1]
    %v86 = vld [vmem:[%s1] sm:$0xf]
    %v87 = vld [vmem:[%s1 + $0x4] sm:$0xf]
    %v88 = vld [vmem:[%s1 + $0x8] sm:$0xf]
    %v89 = vld [vmem:[%s1 + $0xc] sm:$0xf]
    %v90 = vld [vmem:[%s1 + $0x10] sm:$0xf]
    %v91 = vld [vmem:[%s1 + $0x14] sm:$0xf]
    %v92 = vld [vmem:[%s1 + $0x18] sm:$0xf]
    %v93 = vld [vmem:[%s1 + $0x1c] sm:$0xf]
    %v94 = vld [vmem:[%s1 + $0x20] sm:$0xf]
    %v95 = vld [vmem:[%s1 + $0x24] sm:$0xf]
    %v96 = vld [vmem:[%s1 + $0x28] sm:$0xf]
    %v97 = vld [vmem:[%s1 + $0x2c] sm:$0xf]
    %v98 = vld [vmem:[%s1 + $0x30] sm:$0xf]
    %v99 = vld [vmem:[%s1 + $0x34] sm:$0xf]
    %v100 = vld [vmem:[%s1 + $0x38] sm:$0xf]
    %v101 = vld [vmem:[%s1 + $0x3c] sm:$0xf]
    %v102 = vld [vmem:[%s1 + $0x40] sm:$0xf]
    %v103 = vld [vmem:[%s1 + $0x44] sm:$0xf]
    %v104 = vld [vmem:[%s1 + $0x48] sm:$0xf]
    %v105 = vld [vmem:[%s1 + $0x4c] sm:$0xf]
    %v106 = vld [vmem:[%s1 + $0x50] sm:$0xf]
    %v107 = vld [vmem:[%s1 + $0x54] sm:$0xf]
    %v108 = vld [vmem:[%s1 + $0x58] sm:$0xf]
    %v109 = vld [vmem:[%s1 + $0x5c] sm:$0xf]
    %v110 = vld [vmem:[%s1 + $0x60] sm:$0xf]
    %v111 = vld [vmem:[%s1 + $0x64] sm:$0xf]
    %v112 = vld [vmem:[%s1 + $0x68] sm:$0xf]
    %v113 = vld [vmem:[%s1 + $0x6c] sm:$0xf]
    %v114 = vld [vmem:[%s1 + $0x70] sm:$0xf]
    %v115 = vld [vmem:[%s1 + $0x74] sm:$0xf]
    %v116 = vld [vmem:[%s1 + $0x78] sm:$0xf]
    %v117 = vld [vmem:[%s1 + $0x7c] sm:$0xf]
    %119 = vset.pattern.permute.xlu0 0
    %120 = vperm.xlu0 %119, %v21
    %v121 = vpop.permute.xlu0 %120
    %124 = vset.pattern.permute.xlu0 0
    %125 = vperm.xlu0 %124, %v22
    %v126 = vpop.permute.xlu0 %125
    %129 = vset.pattern.permute.xlu0 0
    %130 = vperm.xlu0 %129, %v23
    %v131 = vpop.permute.xlu0 %130
    %134 = vset.pattern.permute.xlu0 0
    %135 = vperm.xlu0 %134, %v24
    %v136 = vpop.permute.xlu0 %135
    %139 = vset.pattern.permute.xlu0 0
    %140 = vperm.xlu0 %139, %v25
    %v141 = vpop.permute.xlu0 %140
    %144 = vset.pattern.permute.xlu0 0
    %145 = vperm.xlu0 %144, %v26
    %v146 = vpop.permute.xlu0 %145
    %149 = vset.pattern.permute.xlu0 0
    %150 = vperm.xlu0 %149, %v27
    %v151 = vpop.permute.xlu0 %150
    %154 = vset.pattern.permute.xlu0 0
    %155 = vperm.xlu0 %154, %v28
    %v156 = vpop.permute.xlu0 %155
    %159 = vset.pattern.permute.xlu0 0
    %160 = vperm.xlu0 %159, %v29
    %v161 = vpop.permute.xlu0 %160
    %164 = vset.pattern.permute.xlu0 0
    %165 = vperm.xlu0 %164, %v30
    %v166 = vpop.permute.xlu0 %165
    %169 = vset.pattern.permute.xlu0 0
    %170 = vperm.xlu0 %169, %v31
    %v171 = vpop.permute.xlu0 %170
    %174 = vset.pattern.permute.xlu0 0
    %175 = vperm.xlu0 %174, %v32
    %v176 = vpop.permute.xlu0 %175
    %179 = vset.pattern.permute.xlu0 0
    %180 = vperm.xlu0 %179, %v33
    %v181 = vpop.permute.xlu0 %180
    %184 = vset.pattern.permute.xlu0 0
    %185 = vperm.xlu0 %184, %v34
    %v186 = vpop.permute.xlu0 %185
    %189 = vset.pattern.permute.xlu0 0
    %190 = vperm.xlu0 %189, %v35
    %v191 = vpop.permute.xlu0 %190
    %194 = vset.pattern.permute.xlu0 0
    %195 = vperm.xlu0 %194, %v36
    %v196 = vpop.permute.xlu0 %195
    %199 = vset.pattern.permute.xlu0 0
    %200 = vperm.xlu0 %199, %v37
    %v201 = vpop.permute.xlu0 %200
    %204 = vset.pattern.permute.xlu0 0
    %205 = vperm.xlu0 %204, %v38
    %v206 = vpop.permute.xlu0 %205
    %209 = vset.pattern.permute.xlu0 0
    %210 = vperm.xlu0 %209, %v39
    %v211 = vpop.permute.xlu0 %210
    %214 = vset.pattern.permute.xlu0 0
    %215 = vperm.xlu0 %214, %v40
    %v216 = vpop.permute.xlu0 %215
    %219 = vset.pattern.permute.xlu0 0
    %220 = vperm.xlu0 %219, %v41
    %v221 = vpop.permute.xlu0 %220
    %224 = vset.pattern.permute.xlu0 0
    %225 = vperm.xlu0 %224, %v42
    %v226 = vpop.permute.xlu0 %225
    %229 = vset.pattern.permute.xlu0 0
    %230 = vperm.xlu0 %229, %v43
    %v231 = vpop.permute.xlu0 %230
    %234 = vset.pattern.permute.xlu0 0
    %235 = vperm.xlu0 %234, %v44
    %v236 = vpop.permute.xlu0 %235
    %239 = vset.pattern.permute.xlu0 0
    %240 = vperm.xlu0 %239, %v45
    %v241 = vpop.permute.xlu0 %240
    %244 = vset.pattern.permute.xlu0 0
    %245 = vperm.xlu0 %244, %v46
    %v246 = vpop.permute.xlu0 %245
    %249 = vset.pattern.permute.xlu0 0
    %250 = vperm.xlu0 %249, %v47
    %v251 = vpop.permute.xlu0 %250
    %254 = vset.pattern.permute.xlu0 0
    %255 = vperm.xlu0 %254, %v48
    %v256 = vpop.permute.xlu0 %255
    %259 = vset.pattern.permute.xlu0 0
    %260 = vperm.xlu0 %259, %v49
    %v261 = vpop.permute.xlu0 %260
    %264 = vset.pattern.permute.xlu0 0
    %265 = vperm.xlu0 %264, %v50
    %v266 = vpop.permute.xlu0 %265
    %269 = vset.pattern.permute.xlu0 0
    %270 = vperm.xlu0 %269, %v51
    %v271 = vpop.permute.xlu0 %270
    %274 = vset.pattern.permute.xlu0 0
    %275 = vperm.xlu0 %274, %v52
    %v276 = vpop.permute.xlu0 %275
    %v310 = vunpack.c.l.b16 %v86
    %v311 = vunpack.c.l.b16 %v87
    %v312 = vunpack.c.l.b16 %v88
    %v313 = vunpack.c.l.b16 %v89
    %v314 = vunpack.c.l.b16 %v90
    %v315 = vunpack.c.l.b16 %v91
    %v316 = vunpack.c.l.b16 %v92
    %v317 = vunpack.c.l.b16 %v93
    %v318 = vunpack.c.l.b16 %v94
    %v319 = vunpack.c.l.b16 %v95
    %v320 = vunpack.c.l.b16 %v96
    %v321 = vunpack.c.l.b16 %v97
    %v322 = vunpack.c.l.b16 %v98
    %v323 = vunpack.c.l.b16 %v99
    %v324 = vunpack.c.l.b16 %v100
    %v325 = vunpack.c.l.b16 %v101
    %v326 = vunpack.c.l.b16 %v102
    %v327 = vunpack.c.l.b16 %v103
    %v328 = vunpack.c.l.b16 %v104
    %v329 = vunpack.c.l.b16 %v105
    %v330 = vunpack.c.l.b16 %v106
    %v331 = vunpack.c.l.b16 %v107
    %v332 = vunpack.c.l.b16 %v108
    %v333 = vunpack.c.l.b16 %v109
    %v334 = vunpack.c.l.b16 %v110
    %v335 = vunpack.c.l.b16 %v111
    %v336 = vunpack.c.l.b16 %v112
    %v337 = vunpack.c.l.b16 %v113
    %v338 = vunpack.c.l.b16 %v114
    %v339 = vunpack.c.l.b16 %v115
    %v340 = vunpack.c.l.b16 %v116
    %v341 = vunpack.c.l.b16 %v117
    %v342 = vpack.c.b16 %v311, %v310
    %v343 = vpack.c.b16 %v313, %v312
    %v344 = vpack.c.b16 %v315, %v314
    %v345 = vpack.c.b16 %v317, %v316
    %v346 = vpack.c.b16 %v319, %v318
    %v347 = vpack.c.b16 %v321, %v320
    %v348 = vpack.c.b16 %v323, %v322
    %v349 = vpack.c.b16 %v325, %v324
    %v350 = vpack.c.b16 %v327, %v326
    %v351 = vpack.c.b16 %v329, %v328
    %v352 = vpack.c.b16 %v331, %v330
    %v353 = vpack.c.b16 %v333, %v332
    %v354 = vpack.c.b16 %v335, %v334
    %v355 = vpack.c.b16 %v337, %v336
    %v356 = vpack.c.b16 %v339, %v338
    %v357 = vpack.c.b16 %v341, %v340
    %vm358 = vcmask 523264
    %v360 = vsel %vm358, %v342, 0
    %v363 = vsel %vm358, %v343, 0
    %v366 = vsel %vm358, %v344, 0
    %v369 = vsel %vm358, %v345, 0
    %v372 = vsel %vm358, %v346, 0
    %v375 = vsel %vm358, %v347, 0
    %v378 = vsel %vm358, %v348, 0
    %v381 = vsel %vm358, %v349, 0
    %v384 = vsel %vm358, %v350, 0
    %v387 = vsel %vm358, %v351, 0
    %v390 = vsel %vm358, %v352, 0
    %v393 = vsel %vm358, %v353, 0
    %v396 = vsel %vm358, %v354, 0
    %v399 = vsel %vm358, %v355, 0
    %v402 = vsel %vm358, %v356, 0
    %v405 = vsel %vm358, %v357, 0
    %v408 = vsel %vm358, %v20, 0
    %410 = vmatpush.bf16.xpose.msra.mxu0 0
    %411 = vmatpush.bf16.xpose.msra.mxu0 0
    %412 = vmatpush.bf16.xpose.msra.mxu0 0
    %413 = vmatpush.bf16.xpose.msra.mxu0 0
    %414 = vmatpush.bf16.xpose.msra.mxu0 0
    %415 = vmatpush.bf16.xpose.msra.mxu0 0
    %416 = vmatpush.bf16.xpose.msra.mxu0 0
    %417 = vmatpush.bf16.xpose.msra.mxu0 %v408
    %418 = vmatmul.bf16.gmra.mxu0 %v360
    %v419 = vpop.f32.mrf.mxu0
    %v420 = vadd.f32 %v121, %v419
    %v421 = vpop.f32.mrf.mxu0
    %v422 = vadd.f32 %v126, %v421
    %423 = vmatmul.bf16.gmra.mxu0 %v363
    %v424 = vpop.f32.mrf.mxu0
    %v425 = vadd.f32 %v131, %v424
    %v426 = vpop.f32.mrf.mxu0
    %v427 = vadd.f32 %v136, %v426
    %428 = vmatmul.bf16.gmra.mxu0 %v366
    %v429 = vpop.f32.mrf.mxu0
    %v430 = vadd.f32 %v141, %v429
    %v431 = vpop.f32.mrf.mxu0
    %v432 = vadd.f32 %v146, %v431
    %433 = vmatmul.bf16.gmra.mxu0 %v369
    %v434 = vpop.f32.mrf.mxu0
    %v435 = vadd.f32 %v151, %v434
    %v436 = vpop.f32.mrf.mxu0
    %v437 = vadd.f32 %v156, %v436
    %438 = vmatmul.bf16.gmra.mxu0 %v372
    %v439 = vpop.f32.mrf.mxu0
    %v440 = vadd.f32 %v161, %v439
    %v441 = vpop.f32.mrf.mxu0
    %v442 = vadd.f32 %v166, %v441
    %443 = vmatmul.bf16.gmra.mxu0 %v375
    %v444 = vpop.f32.mrf.mxu0
    %v445 = vadd.f32 %v171, %v444
    %v446 = vpop.f32.mrf.mxu0
    %v447 = vadd.f32 %v176, %v446
    %448 = vmatmul.bf16.gmra.mxu0 %v378
    %v449 = vpop.f32.mrf.mxu0
    %v450 = vadd.f32 %v181, %v449
    %v451 = vpop.f32.mrf.mxu0
    %v452 = vadd.f32 %v186, %v451
    %453 = vmatmul.bf16.gmra.mxu0 %v381
    %v454 = vpop.f32.mrf.mxu0
    %v455 = vadd.f32 %v191, %v454
    %v456 = vpop.f32.mrf.mxu0
    %v457 = vadd.f32 %v196, %v456
    %458 = vmatmul.bf16.gmra.mxu0 %v384
    %v459 = vpop.f32.mrf.mxu0
    %v460 = vadd.f32 %v201, %v459
    %v461 = vpop.f32.mrf.mxu0
    %v462 = vadd.f32 %v206, %v461
    %463 = vmatmul.bf16.gmra.mxu0 %v387
    %v464 = vpop.f32.mrf.mxu0
    %v465 = vadd.f32 %v211, %v464
    %v466 = vpop.f32.mrf.mxu0
    %v467 = vadd.f32 %v216, %v466
    %468 = vmatmul.bf16.gmra.mxu0 %v390
    %v469 = vpop.f32.mrf.mxu0
    %v470 = vadd.f32 %v221, %v469
    %v471 = vpop.f32.mrf.mxu0
    %v472 = vadd.f32 %v226, %v471
    %473 = vmatmul.bf16.gmra.mxu0 %v393
    %v474 = vpop.f32.mrf.mxu0
    %v475 = vadd.f32 %v231, %v474
    %v476 = vpop.f32.mrf.mxu0
    %v477 = vadd.f32 %v236, %v476
    %478 = vmatmul.bf16.gmra.mxu0 %v396
    %v479 = vpop.f32.mrf.mxu0
    %v480 = vadd.f32 %v241, %v479
    %v481 = vpop.f32.mrf.mxu0
    %v482 = vadd.f32 %v246, %v481
    %483 = vmatmul.bf16.gmra.mxu0 %v399
    %v484 = vpop.f32.mrf.mxu0
    %v485 = vadd.f32 %v251, %v484
    %v486 = vpop.f32.mrf.mxu0
    %v487 = vadd.f32 %v256, %v486
    %488 = vmatmul.bf16.gmra.mxu0 %v402
    %v489 = vpop.f32.mrf.mxu0
    %v490 = vadd.f32 %v261, %v489
    %v491 = vpop.f32.mrf.mxu0
    %v492 = vadd.f32 %v266, %v491
    %493 = vmatmul.bf16.gmra.mxu0 %v405
    %v494 = vpop.f32.mrf.mxu0
    %v495 = vadd.f32 %v271, %v494
    %v496 = vpop.f32.mrf.mxu0
    %v497 = vadd.f32 %v276, %v496
    %498 = vdwg.mxu0
    %v499 = vmax.f32 %v420, 0.0
    %v500 = vmax.f32 %v422, 0.0
    %v501 = vmax.f32 %v425, 0.0
    %v502 = vmax.f32 %v427, 0.0
    %v503 = vmax.f32 %v430, 0.0
    %v504 = vmax.f32 %v432, 0.0
    %v505 = vmax.f32 %v435, 0.0
    %v506 = vmax.f32 %v437, 0.0
    %v507 = vmax.f32 %v440, 0.0
    %v508 = vmax.f32 %v442, 0.0
    %v509 = vmax.f32 %v445, 0.0
    %v510 = vmax.f32 %v447, 0.0
    %v511 = vmax.f32 %v450, 0.0
    %v512 = vmax.f32 %v452, 0.0
    %v513 = vmax.f32 %v455, 0.0
    %v514 = vmax.f32 %v457, 0.0
    %v515 = vmax.f32 %v460, 0.0
    %v516 = vmax.f32 %v462, 0.0
    %v517 = vmax.f32 %v465, 0.0
    %v518 = vmax.f32 %v467, 0.0
    %v519 = vmax.f32 %v470, 0.0
    %v520 = vmax.f32 %v472, 0.0
    %v521 = vmax.f32 %v475, 0.0
    %v522 = vmax.f32 %v477, 0.0
    %v523 = vmax.f32 %v480, 0.0
    %v524 = vmax.f32 %v482, 0.0
    %v525 = vmax.f32 %v485, 0.0
    %v526 = vmax.f32 %v487, 0.0
    %v527 = vmax.f32 %v490, 0.0
    %v528 = vmax.f32 %v492, 0.0
    %v529 = vmax.f32 %v495, 0.0
    %v530 = vmax.f32 %v497, 0.0
    %v531 = vpack.c.bf16 %v500, %v499
    %v532 = vpack.c.bf16 %v502, %v501
    %v533 = vpack.c.bf16 %v504, %v503
    %v534 = vpack.c.bf16 %v506, %v505
    %v535 = vpack.c.bf16 %v508, %v507
    %v536 = vpack.c.bf16 %v510, %v509
    %v537 = vpack.c.bf16 %v512, %v511
    %v538 = vpack.c.bf16 %v514, %v513
    %v539 = vpack.c.bf16 %v516, %v515
    %v540 = vpack.c.bf16 %v518, %v517
    %v541 = vpack.c.bf16 %v520, %v519
    %v542 = vpack.c.bf16 %v522, %v521
    %v543 = vpack.c.bf16 %v524, %v523
    %v544 = vpack.c.bf16 %v526, %v525
    %v545 = vpack.c.bf16 %v528, %v527
    %v546 = vpack.c.bf16 %v530, %v529
    %v547 = vld [vmem:[%s2] sm:$0xff]
    %v548 = vld [vmem:[%s2 + $0x8] sm:$0xff]
    %v549 = vld [vmem:[%s2 + $0x10] sm:$0xff]
    %v550 = vld [vmem:[%s2 + $0x18] sm:$0xff]
    %v551 = vld [vmem:[%s2 + $0x20] sm:$0xff]
    %v552 = vld [vmem:[%s2 + $0x28] sm:$0xff]
    %v553 = vld [vmem:[%s2 + $0x30] sm:$0xff]
    %v554 = vld [vmem:[%s2 + $0x38] sm:$0xff]
    %v555 = vld [vmem:[%s2 + $0x40] sm:$0xff]
    %v556 = vld [vmem:[%s2 + $0x48] sm:$0xff]
    %v557 = vld [vmem:[%s2 + $0x50] sm:$0xff]
    %v558 = vld [vmem:[%s2 + $0x58] sm:$0xff]
    %v559 = vld [vmem:[%s2 + $0x60] sm:$0xff]
    %v560 = vld [vmem:[%s2 + $0x68] sm:$0xff]
    %v561 = vld [vmem:[%s2 + $0x70] sm:$0xff]
    %v562 = vld [vmem:[%s2 + $0x78] sm:$0xff]
    %564 = vset.pattern.permute.xlu0 0
    %565 = vperm.xlu0 %564, %v53
    %v566 = vpop.permute.xlu0 %565
    %569 = vset.pattern.permute.xlu0 0
    %570 = vperm.xlu0 %569, %v54
    %v571 = vpop.permute.xlu0 %570
    %574 = vset.pattern.permute.xlu0 0
    %575 = vperm.xlu0 %574, %v55
    %v576 = vpop.permute.xlu0 %575
    %579 = vset.pattern.permute.xlu0 0
    %580 = vperm.xlu0 %579, %v56
    %v581 = vpop.permute.xlu0 %580
    %584 = vset.pattern.permute.xlu0 0
    %585 = vperm.xlu0 %584, %v57
    %v586 = vpop.permute.xlu0 %585
    %589 = vset.pattern.permute.xlu0 0
    %590 = vperm.xlu0 %589, %v58
    %v591 = vpop.permute.xlu0 %590
    %594 = vset.pattern.permute.xlu0 0
    %595 = vperm.xlu0 %594, %v59
    %v596 = vpop.permute.xlu0 %595
    %599 = vset.pattern.permute.xlu0 0
    %600 = vperm.xlu0 %599, %v60
    %v601 = vpop.permute.xlu0 %600
    %604 = vset.pattern.permute.xlu0 0
    %605 = vperm.xlu0 %604, %v61
    %v606 = vpop.permute.xlu0 %605
    %609 = vset.pattern.permute.xlu0 0
    %610 = vperm.xlu0 %609, %v62
    %v611 = vpop.permute.xlu0 %610
    %614 = vset.pattern.permute.xlu0 0
    %615 = vperm.xlu0 %614, %v63
    %v616 = vpop.permute.xlu0 %615
    %619 = vset.pattern.permute.xlu0 0
    %620 = vperm.xlu0 %619, %v64
    %v621 = vpop.permute.xlu0 %620
    %624 = vset.pattern.permute.xlu0 0
    %625 = vperm.xlu0 %624, %v65
    %v626 = vpop.permute.xlu0 %625
    %629 = vset.pattern.permute.xlu0 0
    %630 = vperm.xlu0 %629, %v66
    %v631 = vpop.permute.xlu0 %630
    %634 = vset.pattern.permute.xlu0 0
    %635 = vperm.xlu0 %634, %v67
    %v636 = vpop.permute.xlu0 %635
    %639 = vset.pattern.permute.xlu0 0
    %640 = vperm.xlu0 %639, %v68
    %v641 = vpop.permute.xlu0 %640
    %v659 = vunpack.c.l.b16 %v547
    %v660 = vunpack.c.h.b16 %v547
    %v661 = vunpack.c.l.b16 %v548
    %v662 = vunpack.c.h.b16 %v548
    %v663 = vunpack.c.l.b16 %v549
    %v664 = vunpack.c.h.b16 %v549
    %v665 = vunpack.c.l.b16 %v550
    %v666 = vunpack.c.h.b16 %v550
    %v667 = vunpack.c.l.b16 %v551
    %v668 = vunpack.c.h.b16 %v551
    %v669 = vunpack.c.l.b16 %v552
    %v670 = vunpack.c.h.b16 %v552
    %v671 = vunpack.c.l.b16 %v553
    %v672 = vunpack.c.h.b16 %v553
    %v673 = vunpack.c.l.b16 %v554
    %v674 = vunpack.c.h.b16 %v554
    %v675 = vunpack.c.l.b16 %v555
    %v676 = vunpack.c.h.b16 %v555
    %v677 = vunpack.c.l.b16 %v556
    %v678 = vunpack.c.h.b16 %v556
    %v679 = vunpack.c.l.b16 %v557
    %v680 = vunpack.c.h.b16 %v557
    %v681 = vunpack.c.l.b16 %v558
    %v682 = vunpack.c.h.b16 %v558
    %v683 = vunpack.c.l.b16 %v559
    %v684 = vunpack.c.h.b16 %v559
    %v685 = vunpack.c.l.b16 %v560
    %v686 = vunpack.c.h.b16 %v560
    %v687 = vunpack.c.l.b16 %v561
    %v688 = vunpack.c.h.b16 %v561
    %v689 = vunpack.c.l.b16 %v562
    %v690 = vunpack.c.h.b16 %v562
    %v691 = vpack.c.b16 %v661, %v659
    %v692 = vpack.c.b16 %v662, %v660
    %v693 = vpack.c.b16 %v665, %v663
    %v694 = vpack.c.b16 %v666, %v664
    %v695 = vpack.c.b16 %v669, %v667
    %v696 = vpack.c.b16 %v670, %v668
    %v697 = vpack.c.b16 %v673, %v671
    %v698 = vpack.c.b16 %v674, %v672
    %v699 = vpack.c.b16 %v677, %v675
    %v700 = vpack.c.b16 %v678, %v676
    %v701 = vpack.c.b16 %v681, %v679
    %v702 = vpack.c.b16 %v682, %v680
    %v703 = vpack.c.b16 %v685, %v683
    %v704 = vpack.c.b16 %v686, %v684
    %v705 = vpack.c.b16 %v689, %v687
    %v706 = vpack.c.b16 %v690, %v688
    %723 = vmatpush.bf16.msra.mxu0 %v538
    %724 = vmatpush.bf16.msra.mxu0 %v537
    %725 = vmatpush.bf16.msra.mxu0 %v536
    %726 = vmatpush.bf16.msra.mxu0 %v535
    %727 = vmatpush.bf16.msra.mxu0 %v534
    %728 = vmatpush.bf16.msra.mxu0 %v533
    %729 = vmatpush.bf16.msra.mxu0 %v532
    %730 = vmatpush.bf16.msra.mxu0 %v531
    %731 = vmatmul.bf16.gmra.mxu0 %v691
    %v732 = vpop.f32.mrf.mxu0
    %v733 = vadd.f32 %v566, %v732
    %v734 = vpop.f32.mrf.mxu0
    %v735 = vadd.f32 %v571, %v734
    %736 = vmatmul.bf16.gmra.mxu0 %v693
    %v737 = vpop.f32.mrf.mxu0
    %v738 = vadd.f32 %v576, %v737
    %v739 = vpop.f32.mrf.mxu0
    %v740 = vadd.f32 %v581, %v739
    %741 = vmatmul.bf16.gmra.mxu0 %v695
    %v742 = vpop.f32.mrf.mxu0
    %v743 = vadd.f32 %v586, %v742
    %v744 = vpop.f32.mrf.mxu0
    %v745 = vadd.f32 %v591, %v744
    %746 = vmatmul.bf16.gmra.mxu0 %v697
    %v747 = vpop.f32.mrf.mxu0
    %v748 = vadd.f32 %v596, %v747
    %v749 = vpop.f32.mrf.mxu0
    %v750 = vadd.f32 %v601, %v749
    %751 = vmatmul.bf16.gmra.mxu0 %v699
    %v752 = vpop.f32.mrf.mxu0
    %v753 = vadd.f32 %v606, %v752
    %v754 = vpop.f32.mrf.mxu0
    %v755 = vadd.f32 %v611, %v754
    %756 = vmatmul.bf16.gmra.mxu0 %v701
    %v757 = vpop.f32.mrf.mxu0
    %v758 = vadd.f32 %v616, %v757
    %v759 = vpop.f32.mrf.mxu0
    %v760 = vadd.f32 %v621, %v759
    %761 = vmatmul.bf16.gmra.mxu0 %v703
    %v762 = vpop.f32.mrf.mxu0
    %v763 = vadd.f32 %v626, %v762
    %v764 = vpop.f32.mrf.mxu0
    %v765 = vadd.f32 %v631, %v764
    %766 = vmatmul.bf16.gmra.mxu0 %v705
    %v767 = vpop.f32.mrf.mxu0
    %v768 = vadd.f32 %v636, %v767
    %v769 = vpop.f32.mrf.mxu0
    %v770 = vadd.f32 %v641, %v769
    %771 = vdwg.mxu0
    %772 = vmatpush.bf16.msra.mxu0 %v546
    %773 = vmatpush.bf16.msra.mxu0 %v545
    %774 = vmatpush.bf16.msra.mxu0 %v544
    %775 = vmatpush.bf16.msra.mxu0 %v543
    %776 = vmatpush.bf16.msra.mxu0 %v542
    %777 = vmatpush.bf16.msra.mxu0 %v541
    %778 = vmatpush.bf16.msra.mxu0 %v540
    %779 = vmatpush.bf16.msra.mxu0 %v539
    %780 = vmatmul.bf16.gmra.mxu0 %v692
    %v781 = vpop.f32.mrf.mxu0
    %v782 = vadd.f32 %v733, %v781
    %v783 = vpop.f32.mrf.mxu0
    %v784 = vadd.f32 %v735, %v783
    %785 = vmatmul.bf16.gmra.mxu0 %v694
    %v786 = vpop.f32.mrf.mxu0
    %v787 = vadd.f32 %v738, %v786
    %v788 = vpop.f32.mrf.mxu0
    %v789 = vadd.f32 %v740, %v788
    %790 = vmatmul.bf16.gmra.mxu0 %v696
    %v791 = vpop.f32.mrf.mxu0
    %v792 = vadd.f32 %v743, %v791
    %v793 = vpop.f32.mrf.mxu0
    %v794 = vadd.f32 %v745, %v793
    %795 = vmatmul.bf16.gmra.mxu0 %v698
    %v796 = vpop.f32.mrf.mxu0
    %v797 = vadd.f32 %v748, %v796
    %v798 = vpop.f32.mrf.mxu0
    %v799 = vadd.f32 %v750, %v798
    %800 = vmatmul.bf16.gmra.mxu0 %v700
    %v801 = vpop.f32.mrf.mxu0
    %v802 = vadd.f32 %v753, %v801
    %v803 = vpop.f32.mrf.mxu0
    %v804 = vadd.f32 %v755, %v803
    %805 = vmatmul.bf16.gmra.mxu0 %v702
    %v806 = vpop.f32.mrf.mxu0
    %v807 = vadd.f32 %v758, %v806
    %v808 = vpop.f32.mrf.mxu0
    %v809 = vadd.f32 %v760, %v808
    %810 = vmatmul.bf16.gmra.mxu0 %v704
    %v811 = vpop.f32.mrf.mxu0
    %v812 = vadd.f32 %v763, %v811
    %v813 = vpop.f32.mrf.mxu0
    %v814 = vadd.f32 %v765, %v813
    %815 = vmatmul.bf16.gmra.mxu0 %v706
    %v816 = vpop.f32.mrf.mxu0
    %v817 = vadd.f32 %v768, %v816
    %v818 = vpop.f32.mrf.mxu0
    %v819 = vadd.f32 %v770, %v818
    %820 = vdwg.mxu0
    %v821 = vmax.f32 %v782, 0.0
    %v822 = vmax.f32 %v784, 0.0
    %v823 = vmax.f32 %v787, 0.0
    %v824 = vmax.f32 %v789, 0.0
    %v825 = vmax.f32 %v792, 0.0
    %v826 = vmax.f32 %v794, 0.0
    %v827 = vmax.f32 %v797, 0.0
    %v828 = vmax.f32 %v799, 0.0
    %v829 = vmax.f32 %v802, 0.0
    %v830 = vmax.f32 %v804, 0.0
    %v831 = vmax.f32 %v807, 0.0
    %v832 = vmax.f32 %v809, 0.0
    %v833 = vmax.f32 %v812, 0.0
    %v834 = vmax.f32 %v814, 0.0
    %v835 = vmax.f32 %v817, 0.0
    %v836 = vmax.f32 %v819, 0.0
    %838 = vset.pattern.permute.xlu0 0
    %839 = vperm.xlu0 %838, %v69
    %v840 = vpop.permute.xlu0 %839
    %843 = vset.pattern.permute.xlu0 0
    %844 = vperm.xlu0 %843, %v70
    %v845 = vpop.permute.xlu0 %844
    %848 = vset.pattern.permute.xlu0 0
    %849 = vperm.xlu0 %848, %v71
    %v850 = vpop.permute.xlu0 %849
    %853 = vset.pattern.permute.xlu0 0
    %854 = vperm.xlu0 %853, %v72
    %v855 = vpop.permute.xlu0 %854
    %858 = vset.pattern.permute.xlu0 0
    %859 = vperm.xlu0 %858, %v73
    %v860 = vpop.permute.xlu0 %859
    %863 = vset.pattern.permute.xlu0 0
    %864 = vperm.xlu0 %863, %v74
    %v865 = vpop.permute.xlu0 %864
    %868 = vset.pattern.permute.xlu0 0
    %869 = vperm.xlu0 %868, %v75
    %v870 = vpop.permute.xlu0 %869
    %873 = vset.pattern.permute.xlu0 0
    %874 = vperm.xlu0 %873, %v76
    %v875 = vpop.permute.xlu0 %874
    %878 = vset.pattern.permute.xlu0 0
    %879 = vperm.xlu0 %878, %v77
    %v880 = vpop.permute.xlu0 %879
    %883 = vset.pattern.permute.xlu0 0
    %884 = vperm.xlu0 %883, %v78
    %v885 = vpop.permute.xlu0 %884
    %888 = vset.pattern.permute.xlu0 0
    %889 = vperm.xlu0 %888, %v79
    %v890 = vpop.permute.xlu0 %889
    %893 = vset.pattern.permute.xlu0 0
    %894 = vperm.xlu0 %893, %v80
    %v895 = vpop.permute.xlu0 %894
    %898 = vset.pattern.permute.xlu0 0
    %899 = vperm.xlu0 %898, %v81
    %v900 = vpop.permute.xlu0 %899
    %903 = vset.pattern.permute.xlu0 0
    %904 = vperm.xlu0 %903, %v82
    %v905 = vpop.permute.xlu0 %904
    %908 = vset.pattern.permute.xlu0 0
    %909 = vperm.xlu0 %908, %v83
    %v910 = vpop.permute.xlu0 %909
    %913 = vset.pattern.permute.xlu0 0
    %914 = vperm.xlu0 %913, %v84
    %v915 = vpop.permute.xlu0 %914
    %v917 = vmul.f32 %v821, %v840
    %v918 = vmul.f32 %v822, %v845
    %v919 = vmul.f32 %v823, %v850
    %v920 = vmul.f32 %v824, %v855
    %v921 = vmul.f32 %v825, %v860
    %v922 = vmul.f32 %v826, %v865
    %v923 = vmul.f32 %v827, %v870
    %v924 = vmul.f32 %v828, %v875
    %v925 = vmul.f32 %v829, %v880
    %v926 = vmul.f32 %v830, %v885
    %v927 = vmul.f32 %v831, %v890
    %v928 = vmul.f32 %v832, %v895
    %v929 = vmul.f32 %v833, %v900
    %v930 = vmul.f32 %v834, %v905
    %v931 = vmul.f32 %v835, %v910
    %v932 = vmul.f32 %v836, %v915
    %vm933 = vcmask 64512
    %v934 = vsel %vm933, %v917, 0.0
    %v935 = vsel %vm933, %v918, 0.0
    %v936 = vadd.f32 %v934, %v935
    %v937 = vsel %vm933, %v919, 0.0
    %v938 = vadd.f32 %v936, %v937
    %v939 = vsel %vm933, %v920, 0.0
    %v940 = vadd.f32 %v938, %v939
    %v941 = vsel %vm933, %v921, 0.0
    %v942 = vadd.f32 %v940, %v941
    %v943 = vsel %vm933, %v922, 0.0
    %v944 = vadd.f32 %v942, %v943
    %v945 = vsel %vm933, %v923, 0.0
    %v946 = vadd.f32 %v944, %v945
    %v947 = vsel %vm933, %v924, 0.0
    %v948 = vadd.f32 %v946, %v947
    %v949 = vsel %vm933, %v925, 0.0
    %v950 = vadd.f32 %v948, %v949
    %v951 = vsel %vm933, %v926, 0.0
    %v952 = vadd.f32 %v950, %v951
    %v953 = vsel %vm933, %v927, 0.0
    %v954 = vadd.f32 %v952, %v953
    %v955 = vsel %vm933, %v928, 0.0
    %v956 = vadd.f32 %v954, %v955
    %v957 = vsel %vm933, %v929, 0.0
    %v958 = vadd.f32 %v956, %v957
    %v959 = vsel %vm933, %v930, 0.0
    %v960 = vadd.f32 %v958, %v959
    %v961 = vsel %vm933, %v931, 0.0
    %v962 = vadd.f32 %v960, %v961
    %v963 = vsel %vm933, %v932, 0.0
    %v964 = vadd.f32 %v962, %v963
    %v965 = vrot.slane %v964, 4
    %v966 = vadd.f32 %v964, %v965
    %v967 = vrot.slane %v966, 2
    %v968 = vadd.f32 %v966, %v967
    %v969 = vrot.slane %v968, 1
    %v970 = vadd.f32 %v968, %v969
    %972 = vset.pattern.permute.xlu0 0
    %973 = vperm.xlu0 %972, %v85
    %v974 = vpop.permute.xlu0 %973
    %v976 = vadd.f32 %v970, %v974
    %v977 = vxor.u32 %v976, 2147483648
    %v978 = vmul.f32 %v977, 1.442695
    %v979 = vpow.pop %v978
    %v980 = vadd.f32 %v979, 1.0
    %v981 = vrcp.pop %v980
    %v982 = vmul.f32 %v980, %v981
    %v983 = vsub.f32 1.0, %v982
    %v984 = vmul.f32 %v981, %v983
    %v985 = vadd.f32 %v981, %v984
    %vm986 = vweird.f32 %v980
    %vm987 = vweird.f32 %v981
    %vm988 = vmor %vm986, %vm987
    %v989 = vsel %vm988, %v981, %v985
    %v990 = vand.u32 2147483647, %v980
    %vm991 = vcmp.eq.f32.partialorder %v990, 8.507059e+37
    %v992 = vand.u32 %v980, 2147483648
    %v993 = vor.u32 1.1754944e-38, %v992
    %v994 = vsel %vm991, %v993, %v989
    %v995 = vmul.f32 1.0, %v994
    %vm996 = vcmask 57344
    %997 = vst.msk [vmem:[#allocation2] sm:$0x1] %vm996, %v995
    // Predicated region
    $region18: #{tpu_custom_call.1} parent=1 // pred_check
      _
    $region19: #{tpu_custom_call.1} parent=1 // pred_check_branch
      %999 = sbr.rel (0) target = $region21
    $region20: #{tpu_custom_call.1} parent=1 // pred_region
      %1001 = vsyncadd [#allocation3], 0
      %s1003 = sshll.u32 [#allocation2], 4
      %s1004 = int_to_ptr.vmem [resolvable:$true] %s1003
      %s1005 = sshll.u32 %s4, 4
      %s1006 = int_to_ptr.hbm [resolvable:$true] %s1005
      %1008 = dma.vmem_to_hbm [thread:$0]  %s1004, 16, %s1006, [#allocation3]
    $region21: #{tpu_custom_call.1} parent=1 // pred_fallthru
      _
    // Predicated region
    $region22: #{tpu_custom_call.1} parent=1 // pred_check
      _
    $region23: #{tpu_custom_call.1} parent=1 // pred_check_branch
      %1010 = sbr.rel (0) target = $region25
    $region24: #{tpu_custom_call.1} parent=1 // pred_region
      %1012 = dma.done [#allocation3], 16
    $region25: #{tpu_custom_call.1} parent=1 // pred_fallthru
      _
    %1013 = vsyncpa [#allocation3], 1

</llo_original>
